<compile_context>
chip_gen: v7x
topology: tpu7x:2x2x1
jax: 0.10.0
libtpu: 0.0.40
codegen_flags: <defaults>
</compile_context>

<pallas_src>
import functools
import math

import jax
import jax.numpy as jnp
from jax import lax
from jax.experimental import pallas as pl
from jax.experimental.pallas import tpu as pltpu


_NEG_INF = -1e9   # additive mask; exp(-1e9 - m) underflows to exactly 0.0


# ----------------------------------------------------------------------------
# Small helpers
# ----------------------------------------------------------------------------
def _pick_bt(b, h, max_lanes=1024):
    """Largest batch tile BT s.t. BT | b and BT*h is a multiple of 128 lanes."""
    cap = max(1, min(b, max_lanes // max(1, h)))
    for bt in range(cap, 0, -1):
        if b % bt == 0 and (bt * h) % 128 == 0:
            return bt
    return b     # fallback: one block spanning the full batch (always legal)


def _pick_cols(n, cap=2048):
    """Largest lane-aligned column tile dividing n (for the 1x1 convs)."""
    for t in range(min(n, cap), 0, -1):
        if n % t == 0 and t % 128 == 0:
            return t
    return n


def _qkv_row_perm(groups, gp):
    """Row permutation putting all q rows, then all k rows, then all v rows
    (group-major inside each block) so in-kernel slices are contiguous."""
    gpq = gp // 2
    q_idx = [g * 2 * gp + c for g in range(groups) for c in range(gpq)]
    k_idx = [g * 2 * gp + gpq + c for g in range(groups) for c in range(gpq)]
    v_idx = [g * 2 * gp + 2 * gpq + c for g in range(groups) for c in range(gp)]
    return jnp.asarray(q_idx + k_idx + v_idx, dtype=jnp.int32)


def _relative_embeddings(relative, gp, kernel_size):
    qi = jnp.arange(kernel_size)[None, :]
    ki = jnp.arange(kernel_size)[:, None]
    rel_idx = (ki - qi + kernel_size - 1).reshape(-1)
    all_emb = jnp.take(relative, rel_idx, axis=1).reshape(
        2 * gp, kernel_size, kernel_size)
    gpq = gp // 2
    return all_emb[:gpq], all_emb[gpq:2 * gpq], all_emb[2 * gpq:]


# ----------------------------------------------------------------------------
# Pallas kernel: axial attention over BT slabs per grid step
# ----------------------------------------------------------------------------
def _axial_attention_kernel(x_ref, w_ref, qkv_s_ref, qkv_b_ref,
                            qe_ref, keT_ref, ve_ref, eye_ref, mask_ref,
                            sim_s_ref, sim_b_ref,
                            svs_ref, svb_ref, sves_ref, sveb_ref,
                            out_ref, *, mxu_dtype):
    """One grid step == BT axial slabs, laid out lane-dense as (rows, L=BT*H).

    All per-slab (H, H) attention matrices live inside one block-diagonal
    (L, L) tile; off-block entries are killed with an additive -1e9 mask before
    the softmax, so all matmuls stay 2-D and lane-dense.
    """
    two_out = w_ref.shape[0]
    gpq, L, _h = qe_ref.shape
    gp = ve_ref.shape[0]
    out_planes = two_out // 2
    groups = out_planes // gp
    nq = groups * gpq

    # 1x1 conv1d == channel matmul (single MXU op), then eval-mode BN affine.
    qkv = jnp.dot(w_ref[...].astype(mxu_dtype), x_ref[...].astype(mxu_dtype),
                  preferred_element_type=jnp.float32)              # (2*OUT, L)
    qkv = qkv * qkv_s_ref[...] + qkv_b_ref[...]

    qe = qe_ref[...]        # (gpq, L, H) row-tiled:  qe[c, b*H+i, j] = qE[c,i,j]
    keT = keT_ref[...]      # (gpq, H, L) col-tiled:  keT[c, i, b*H+j] = kE[c,j,i]
    ve = ve_ref[...]        # (gp,  L, H) row-tiled:  ve[c, b*H+i, j] = vE[c,i,j]
    eye = eye_ref[...]      # (L, H) vertically stacked HxH identity blocks
    mask = mask_ref[...]    # (L, L) 0 on the slab block-diagonal, -1e9 elsewhere

    for g in range(groups):
        qg = qkv[g * gpq:(g + 1) * gpq, :]                         # (gpq, L)
        kg = qkv[nq + g * gpq: nq + (g + 1) * gpq, :]              # (gpq, L)
        vg = qkv[2 * nq + g * gp: 2 * nq + (g + 1) * gp, :]        # (gp,  L)

        # qk[(b,i),(b',j)] = sum_c q[c,bi] k[c,b'j]  (off-block masked later).
        qk = lax.dot_general(qg, kg, (((0,), (0,)), ((), ())),
                             preferred_element_type=jnp.float32)   # (L, L)
        # qr_rows[(b,i), j] = sum_c q[c,bi] * qE[c,i,j]
        qr_rows = jnp.sum(qg[:, :, None] * qe, axis=0)             # (L, H)
        # kcols[i, (b,j)]  = sum_c k[c,bj] * kE[c,j,i]   (kE pre-transposed)
        kcols = jnp.sum(kg[:, None, :] * keT, axis=0)              # (H, L)

        s_qk = sim_s_ref[0, g]
        s_qr = sim_s_ref[1, g]
        s_kr = sim_s_ref[2, g]
        shift = sim_b_ref[0, g] + sim_b_ref[1, g] + sim_b_ref[2, g]

        # Broadcast the row / column relative terms to (L, L) with the stacked
        # identity (MXU); off-block values are wrong but masked right after.
        qr_full = lax.dot_general(qr_rows * s_qr, eye, (((1,), (1,)), ((), ())),
                                  preferred_element_type=jnp.float32)  # (L, L)
        kr_full = jnp.dot(eye, kcols * s_kr,
                          preferred_element_type=jnp.float32)          # (L, L)

        logits = qk * s_qk + qr_full + kr_full + shift + mask

        # Per-slab softmax over the key axis (off-block entries exp to 0.0).
        m = jnp.max(logits, axis=-1, keepdims=True)
        p = jnp.exp(logits - m)
        den = jnp.sum(p, axis=-1, keepdims=True)
        sim = p * pl.reciprocal(den, approx=True)                  # (L, L)

        # sv[c,(b,i)] = sum_j sim[(b,i),(b,j)] * v[c,(b,j)]   (MXU)
        sv = lax.dot_general(vg, sim, (((1,), (1,)), ((), ())),
                             preferred_element_type=jnp.float32)   # (gp, L)
        # Fold the block-diagonal similarity back to (L, H), contract with vE.
        sim_fold = jnp.dot(sim, eye, preferred_element_type=jnp.float32)  # (L, H)
        sve = jnp.sum(sim_fold[None, :, :] * ve, axis=-1)          # (gp, L)

        # Output BN (interleaved sv/sve channels) + pair-sum, stored in place.
        lo = g * gp
        out_ref[lo:lo + gp, :] = (
            sv * svs_ref[lo:lo + gp, :] + svb_ref[lo:lo + gp, :]
            + sve * sves_ref[lo:lo + gp, :] + sveb_ref[lo:lo + gp, :]
        ).astype(out_ref.dtype)


def axial_attention_forward(x, params, *, groups, kernel_size, width=False,
                            stride=1, mxu_dtype=jnp.float32):
    assert stride == 1, "stride > 1 (AvgPool) not implemented"
    w_qkv = params["w_qkv"]
    out_planes = w_qkv.shape[0] // 2
    gp = out_planes // groups
    gpq = gp // 2
    n, c, h_img, w_img = x.shape

    # NCHW -> (C, N, other, axial); the axial dim and the slab batch are
    # flattened together into the lane axis.
    if width:
        xt = jnp.transpose(x, (1, 0, 2, 3))     # (C, N, H, W): axial = W
        other, h_ax = h_img, w_img
    else:
        xt = jnp.transpose(x, (1, 0, 3, 2))     # (C, N, W, H): axial = H
        other, h_ax = w_img, h_img
    assert h_ax == kernel_size
    b = n * other
    xf = xt.reshape(c, b * h_ax).astype(jnp.float32)

    bt = _pick_bt(b, h_ax)
    L = bt * h_ax

    # Relative position embeddings (shared across groups), pre-tiled /
    # pre-transposed so the kernel never reshapes or transposes them.
    q_emb, k_emb, v_emb = _relative_embeddings(params["relative"], gp, kernel_size)
    qe_rt = jnp.tile(q_emb, (1, bt, 1)).astype(jnp.float32)                   # (gpq, L, H)
    keT_ct = jnp.tile(jnp.transpose(k_emb, (0, 2, 1)),
                      (1, 1, bt)).astype(jnp.float32)                         # (gpq, H, L)
    ve_rt = jnp.tile(v_emb, (1, bt, 1)).astype(jnp.float32)                   # (gp, L, H)
    eye = jnp.tile(jnp.eye(h_ax, dtype=jnp.float32), (bt, 1))                 # (L, H)
    ids = jnp.arange(L, dtype=jnp.int32) // h_ax
    mask = jnp.where(ids[:, None] == ids[None, :], 0.0, _NEG_INF)             # (L, L)
    mask = mask.astype(jnp.float32)

    # Re-order the qkv rows so the q / k / v channel blocks are contiguous.
    perm = _qkv_row_perm(groups, gp)
    w_r = w_qkv[perm].astype(jnp.float32)
    qkv_s = params["qkv_scale"][perm].reshape(2 * out_planes, 1)
    qkv_b = params["qkv_shift"][perm].reshape(2 * out_planes, 1)

    sim_s = params["sim_scale"].reshape(3, groups)
    sim_b = params["sim_shift"].reshape(3, groups)
    # output BN channels interleave (sv, sve) per output channel: 2*oc, 2*oc+1
    sv_s = params["out_scale"][0::2].reshape(out_planes, 1)
    sv_b = params["out_shift"][0::2].reshape(out_planes, 1)
    sve_s = params["out_scale"][1::2].reshape(out_planes, 1)
    sve_b = params["out_shift"][1::2].reshape(out_planes, 1)

    flops = int(2 * (2 * out_planes) * c * b * h_ax
                + 2 * b * groups * h_ax * h_ax * (3 * gpq + 2 * gp)
                + 6 * b * groups * h_ax * h_ax)
    transcendentals = int(b * groups * h_ax * h_ax * bt)
    bytes_accessed = int(4 * (xf.size + out_planes * b * h_ax + w_r.size
                              + qe_rt.size + keT_ct.size + ve_rt.size
                              + eye.size + mask.size))

    smem_spec = pl.BlockSpec(memory_space=pltpu.MemorySpace.SMEM)
    kernel = functools.partial(_axial_attention_kernel, mxu_dtype=mxu_dtype)

    out = pl.pallas_call(
        kernel,
        out_shape=jax.ShapeDtypeStruct((out_planes, b * h_ax), jnp.float32),
        grid_spec=pltpu.PrefetchScalarGridSpec(
            num_scalar_prefetch=0,
            grid=(b // bt,),
            in_specs=[
                pl.BlockSpec((c, L), lambda i: (0, i)),                 # x slabs
                pl.BlockSpec((2 * out_planes, c), lambda i: (0, 0)),    # w_qkv (reordered)
                pl.BlockSpec((2 * out_planes, 1), lambda i: (0, 0)),    # bn_qkv scale
                pl.BlockSpec((2 * out_planes, 1), lambda i: (0, 0)),    # bn_qkv shift
                pl.BlockSpec((gpq, L, h_ax), lambda i: (0, 0, 0)),      # q embedding (row-tiled)
                pl.BlockSpec((gpq, h_ax, L), lambda i: (0, 0, 0)),      # k embedding (T, col-tiled)
                pl.BlockSpec((gp, L, h_ax), lambda i: (0, 0, 0)),       # v embedding (row-tiled)
                pl.BlockSpec((L, h_ax), lambda i: (0, 0)),              # stacked identity
                pl.BlockSpec((L, L), lambda i: (0, 0)),                 # block-diagonal mask
                smem_spec,                                              # bn_sim scale (3, G)
                smem_spec,                                              # bn_sim shift (3, G)
                pl.BlockSpec((out_planes, 1), lambda i: (0, 0)),        # bn_out sv scale
                pl.BlockSpec((out_planes, 1), lambda i: (0, 0)),        # bn_out sv shift
                pl.BlockSpec((out_planes, 1), lambda i: (0, 0)),        # bn_out sve scale
                pl.BlockSpec((out_planes, 1), lambda i: (0, 0)),        # bn_out sve shift
            ],
            out_specs=pl.BlockSpec((out_planes, L), lambda i: (0, i)),
        ),
        compiler_params=pltpu.CompilerParams(
            dimension_semantics=("parallel",),
            vmem_limit_bytes=32 * 1024 * 1024),
        cost_estimate=pl.CostEstimate(flops=flops,
                                      transcendentals=transcendentals,
                                      bytes_accessed=bytes_accessed),
    )(xf, w_r, qkv_s, qkv_b, qe_rt, keT_ct, ve_rt, eye, mask,
      sim_s, sim_b, sv_s, sv_b, sve_s, sve_b)

    out = out.reshape(out_planes, n, other, h_ax)
    if width:
        out = jnp.transpose(out, (1, 0, 2, 3))   # (N, OUT, H, W)
    else:
        out = jnp.transpose(out, (1, 0, 3, 2))   # (N, OUT, H, W)
    return out


# ----------------------------------------------------------------------------
# Pallas kernels: fused 1x1 conv + BN (+ReLU / residual)
# ----------------------------------------------------------------------------
def _pointwise_kernel(x_ref, w_ref, s_ref, b_ref, o_ref, *, relu_in, relu_out):
    x = x_ref[...]
    if relu_in:
        x = jnp.maximum(x, 0.0)
    y = jnp.dot(w_ref[...], x, preferred_element_type=jnp.float32)
    y = y * s_ref[...] + b_ref[...]
    if relu_out:
        y = jnp.maximum(y, 0.0)
    o_ref[...] = y.astype(o_ref.dtype)


def _pointwise_res_kernel(x_ref, w_ref, s_ref, b_ref, r_ref, o_ref, *,
                          relu_in, relu_out):
    x = x_ref[...]
    if relu_in:
        x = jnp.maximum(x, 0.0)
    y = jnp.dot(w_ref[...], x, preferred_element_type=jnp.float32)
    y = y * s_ref[...] + b_ref[...] + r_ref[...]
    if relu_out:
        y = jnp.maximum(y, 0.0)
    o_ref[...] = y.astype(o_ref.dtype)


def conv1x1_bn_forward(x, w, scale, shift, *, residual=None,
                       relu_in=False, relu_out=False):
    """Fused 1x1 conv2d (no bias) + eval-mode BN, lane-dense over N*H*W."""
    n, c, h, wdim = x.shape
    co = w.shape[0]
    cols = n * h * wdim
    xf = jnp.transpose(x, (1, 0, 2, 3)).reshape(c, cols).astype(jnp.float32)
    s = scale.reshape(co, 1).astype(jnp.float32)
    b = shift.reshape(co, 1).astype(jnp.float32)
    tn = _pick_cols(cols)

    in_specs = [
        pl.BlockSpec((c, tn), lambda i: (0, i)),
        pl.BlockSpec((co, c), lambda i: (0, 0)),
        pl.BlockSpec((co, 1), lambda i: (0, 0)),
        pl.BlockSpec((co, 1), lambda i: (0, 0)),
    ]
    args = [xf, w.astype(jnp.float32), s, b]
    if residual is not None:
        rf = jnp.transpose(residual, (1, 0, 2, 3)).reshape(co, cols)
        rf = rf.astype(jnp.float32)
        in_specs.append(pl.BlockSpec((co, tn), lambda i: (0, i)))
        args.append(rf)
        kernel = functools.partial(_pointwise_res_kernel,
                                   relu_in=relu_in, relu_out=relu_out)
    else:
        kernel = functools.partial(_pointwise_kernel,
                                   relu_in=relu_in, relu_out=relu_out)

    out = pl.pallas_call(
        kernel,
        out_shape=jax.ShapeDtypeStruct((co, cols), jnp.float32),
        grid_spec=pltpu.PrefetchScalarGridSpec(
            num_scalar_prefetch=0,
            grid=(cols // tn,),
            in_specs=in_specs,
            out_specs=pl.BlockSpec((co, tn), lambda i: (0, i)),
        ),
        compiler_params=pltpu.CompilerParams(
            dimension_semantics=("parallel",),
            vmem_limit_bytes=32 * 1024 * 1024),
    )(*args)
    return jnp.transpose(out.reshape(co, n, h, wdim), (1, 0, 2, 3))


# ----------------------------------------------------------------------------
# Full AxialBlock forward (stride=1, downsample=None)
# ----------------------------------------------------------------------------
def axial_block_forward(x, params, *, groups, kernel_size, mxu_dtype=jnp.float32):
    out = conv1x1_bn_forward(x, params["w_down"], params["bn1_scale"],
                             params["bn1_shift"], relu_out=True)
    out = axial_attention_forward(out, params["att_h"], groups=groups,
                                  kernel_size=kernel_size, width=False,
                                  mxu_dtype=mxu_dtype)
    out = axial_attention_forward(out, params["att_w"], groups=groups,
                                  kernel_size=kernel_size, width=True,
                                  mxu_dtype=mxu_dtype)
    # relu(width_block output), conv_up + bn2, residual add and final relu are
    # all fused into a single pointwise kernel.
    out = conv1x1_bn_forward(out, params["w_up"], params["bn2_scale"],
                             params["bn2_shift"], residual=x,
                             relu_in=True, relu_out=True)
    return out


# ----------------------------------------------------------------------------
# Parameter construction (deterministic; eval-mode BN folded to scale/shift)
# ----------------------------------------------------------------------------
def _bn_affine(key, n, eps=1e-5):
    k1, k2, k3, k4 = jax.random.split(key, 4)
    gamma = 1.0 + 0.1 * jax.random.normal(k1, (n,), jnp.float32)
    beta = 0.1 * jax.random.normal(k2, (n,), jnp.float32)
    mean = 0.1 * jax.random.normal(k3, (n,), jnp.float32)
    var = 1.0 + 0.1 * jnp.abs(jax.random.normal(k4, (n,), jnp.float32))
    scale = gamma / jnp.sqrt(var + eps)
    shift = beta - mean * scale
    return scale, shift


def make_attention_params(key, in_planes, out_planes, groups, kernel_size):
    gp = out_planes // groups
    ks = jax.random.split(key, 5)
    w_qkv = (jax.random.normal(ks[0], (2 * out_planes, in_planes), jnp.float32)
             * math.sqrt(1.0 / in_planes))
    relative = (jax.random.normal(ks[1], (2 * gp, 2 * kernel_size - 1), jnp.float32)
                * math.sqrt(1.0 / gp))
    qkv_scale, qkv_shift = _bn_affine(ks[2], 2 * out_planes)
    sim_scale, sim_shift = _bn_affine(ks[3], 3 * groups)
    out_scale, out_shift = _bn_affine(ks[4], 2 * out_planes)
    return dict(w_qkv=w_qkv, relative=relative,
                qkv_scale=qkv_scale, qkv_shift=qkv_shift,
                sim_scale=sim_scale, sim_shift=sim_shift,
                out_scale=out_scale, out_shift=out_shift)


def make_block_params(key, inplanes, planes, groups, kernel_size, base_width=64):
    expansion = 2
    width = int(planes * (base_width / 64.0))
    ks = jax.random.split(key, 6)
    w_down = (jax.random.normal(ks[0], (width, inplanes), jnp.float32)
              * math.sqrt(2.0 / inplanes))
    bn1_scale, bn1_shift = _bn_affine(ks[1], width)
    att_h = make_attention_params(ks[2], width, width, groups, kernel_size)
    att_w = make_attention_params(ks[3], width, width, groups, kernel_size)
    w_up = (jax.random.normal(ks[4], (planes * expansion, width), jnp.float32)
            * math.sqrt(2.0 / width))
    bn2_scale, bn2_shift = _bn_affine(ks[5], planes * expansion)
    return dict(w_down=w_down, bn1_scale=bn1_scale, bn1_shift=bn1_shift,
                att_h=att_h, att_w=att_w,
                w_up=w_up, bn2_scale=bn2_scale, bn2_shift=bn2_shift)


# ----------------------------------------------------------------------------
# Pure-JAX references (mirror the PyTorch forward, eval-mode BN)
# ----------------------------------------------------------------------------
def axial_attention_reference(x, params, *, groups, kernel_size, width=False):
    hp = lax.Precision.HIGHEST
    w_qkv = params["w_qkv"]
    out_planes = w_qkv.shape[0] // 2
    gp = out_planes // groups
    gpq = gp // 2

    if width:
        xp = jnp.transpose(x, (0, 2, 1, 3))
    else:
        xp = jnp.transpose(x, (0, 3, 1, 2))
    n, w_ax, c, h_ax = xp.shape
    b = n * w_ax
    xf = xp.reshape(b, c, h_ax).astype(jnp.float32)

    qkv = jnp.einsum('oc,bch->boh', w_qkv, xf, precision=hp)
    qkv = qkv * params["qkv_scale"][None, :, None] + params["qkv_shift"][None, :, None]
    midx = qkv.reshape(b, groups, gp * 2, h_ax)
    q, k, v = midx[:, :, :gpq], midx[:, :, gpq:2 * gpq], midx[:, :, 2 * gpq:]

    q_emb, k_emb, v_emb = _relative_embeddings(params["relative"], gp, kernel_size)

    qr = jnp.einsum('bgci,cij->bgij', q, q_emb, precision=hp)
    kr = jnp.einsum('bgci,cij->bgij', k, k_emb, precision=hp).transpose(0, 1, 3, 2)
    qk = jnp.einsum('bgci,bgcj->bgij', q, k, precision=hp)
    stacked = jnp.concatenate([qk, qr, kr], axis=1)
    stacked = (stacked * params["sim_scale"][None, :, None, None]
               + params["sim_shift"][None, :, None, None])
    logits = stacked.reshape(b, 3, groups, h_ax, h_ax).sum(axis=1)
    similarity = jax.nn.softmax(logits, axis=3)

    sv = jnp.einsum('bgij,bgcj->bgci', similarity, v, precision=hp)
    sve = jnp.einsum('bgij,cij->bgci', similarity, v_emb, precision=hp)
    stacked_out = jnp.concatenate([sv, sve], axis=-1).reshape(b, out_planes * 2, h_ax)
    stacked_out = (stacked_out * params["out_scale"][None, :, None]
                   + params["out_shift"][None, :, None])
    output = stacked_out.reshape(n, w_ax, out_planes, 2, h_ax).sum(axis=-2)
    if width:
        output = jnp.transpose(output, (0, 2, 1, 3))
    else:
        output = jnp.transpose(output, (0, 2, 3, 1))
    return output


def conv1x1_bn_reference(x, w, scale, shift, *, residual=None,
                         relu_in=False, relu_out=False):
    hp = lax.Precision.HIGHEST
    xx = jnp.maximum(x, 0.0) if relu_in else x
    y = jnp.einsum('oc,nchw->nohw', w, xx, precision=hp)
    y = y * scale[None, :, None, None] + shift[None, :, None, None]
    if residual is not None:
        y = y + residual
    if relu_out:
        y = jnp.maximum(y, 0.0)
    return y


def axial_block_reference(x, params, *, groups, kernel_size):
    out = conv1x1_bn_reference(x, params["w_down"], params["bn1_scale"],
                               params["bn1_shift"], relu_out=True)
    out = axial_attention_reference(out, params["att_h"], groups=groups,
                                    kernel_size=kernel_size, width=False)
    out = axial_attention_reference(out, params["att_w"], groups=groups,
                                    kernel_size=kernel_size, width=True)
    out = conv1x1_bn_reference(out, params["w_up"], params["bn2_scale"],
                               params["bn2_shift"], residual=x,
                               relu_in=True, relu_out=True)
    return out


if __name__ == "__main__":
    # AxialBlock config: inplanes == planes * expansion so the identity shortcut
    # needs no downsample; kernel_size == spatial extent; width == planes.
    N, inplanes, planes, groups, kernel_size = 2, 16, 8, 2, 16
    H = W = kernel_size

    key = jax.random.PRNGKey(0)
    kx, kp = jax.random.split(key)
    x = jax.random.normal(kx, (N, inplanes, H, W), jnp.float32)      # NCHW
    params = make_block_params(kp, inplanes, planes, groups, kernel_size)

    out = axial_block_forward(x, params, groups=groups, kernel_size=kernel_size)
    out = jax.block_until_ready(out)

    ref = axial_block_reference(x, params, groups=groups, kernel_size=kernel_size)
    ref = jax.block_until_ready(ref)

    assert out.shape == (N, planes * 2, H, W), out.shape
    max_err = float(jnp.max(jnp.abs(out - ref)))
    assert jnp.allclose(out, ref, atol=2e-2, rtol=2e-2), max_err
    print("KERNEL_OK")
</pallas_src>

<mosaic_0001>
module attributes {stable_mosaic.version = 11 : i64} {
  func.func @_pointwise_kernel(%arg0: i32, %arg1: memref<16x512xf32, #tpu.memory_space<vmem>>, %arg2: memref<8x16xf32, #tpu.memory_space<vmem>>, %arg3: memref<8x1xf32, #tpu.memory_space<vmem>>, %arg4: memref<8x1xf32, #tpu.memory_space<vmem>>, %arg5: memref<8x512xf32, #tpu.memory_space<vmem>>) attributes {dimension_semantics = [#tpu.dimension_semantics<parallel>], iteration_bounds = array<i64: 1>, scalar_prefetch = 0 : i64, scratch_operands = 0 : i64, tpu.core_type = #tpu.core_type<tc>, window_params = [{transform_indices = @transform_0, window_bounds = array<i64: 16, 512>}, {pipeline_mode = #tpu.pipeline_mode<synchronous>, transform_indices = @transform_1, window_bounds = array<i64: 8, 16>}, {pipeline_mode = #tpu.pipeline_mode<synchronous>, transform_indices = @transform_2, window_bounds = array<i64: 8, 1>}, {pipeline_mode = #tpu.pipeline_mode<synchronous>, transform_indices = @transform_3, window_bounds = array<i64: 8, 1>}, {transform_indices = @transform_4, window_bounds = array<i64: 8, 512>}]} {
    %c0 = arith.constant 0 : index
    %c0_0 = arith.constant 0 : index
    %0 = vector.load %arg1[%c0, %c0_0] : memref<16x512xf32, #tpu.memory_space<vmem>>, vector<16x512xf32>
    %c0_1 = arith.constant 0 : index
    %c0_2 = arith.constant 0 : index
    %1 = vector.load %arg2[%c0_1, %c0_2] : memref<8x16xf32, #tpu.memory_space<vmem>>, vector<8x16xf32>
    %cst = arith.constant dense<0.000000e+00> : vector<8x512xf32>
    %2 = tpu.matmul %1, %0, %cst {dimension_numbers = #tpu.dot_dimension_numbers<[1], [0], [0], [1], [0, 0, 1, 1], [], []>} : vector<8x16xf32>, vector<16x512xf32>, vector<8x512xf32> -> vector<8x512xf32>
    %c0_3 = arith.constant 0 : index
    %c0_4 = arith.constant 0 : index
    %3 = vector.load %arg3[%c0_3, %c0_4] : memref<8x1xf32, #tpu.memory_space<vmem>>, vector<8x1xf32>
    %4 = vector.broadcast %3 : vector<8x1xf32> to vector<8x512xf32>
    %5 = arith.mulf %2, %4 : vector<8x512xf32>
    %c0_5 = arith.constant 0 : index
    %c0_6 = arith.constant 0 : index
    %6 = vector.load %arg4[%c0_5, %c0_6] : memref<8x1xf32, #tpu.memory_space<vmem>>, vector<8x1xf32>
    %7 = vector.broadcast %6 : vector<8x1xf32> to vector<8x512xf32>
    %8 = arith.addf %5, %7 : vector<8x512xf32>
    %cst_7 = arith.constant 0.000000e+00 : f32
    %9 = vector.broadcast %cst_7 : f32 to vector<8x512xf32>
    %10 = arith.maximumf %8, %9 : vector<8x512xf32>
    %c0_8 = arith.constant 0 : index
    %c0_9 = arith.constant 0 : index
    %11 = vector.load %arg5[%c0_8, %c0_9] : memref<8x512xf32, #tpu.memory_space<vmem>>, vector<8x512xf32>
    tpu.vector_store %arg5[%c0_8, %c0_9], %10 {strides = array<i32>} : memref<8x512xf32, #tpu.memory_space<vmem>>, vector<8x512xf32>,
    return
  }
  func.func @transform_0(%arg0: i32) -> (i32, i32) {
    %c0_i32 = arith.constant 0 : i32
    %c0_i32_0 = arith.constant 0 : i32
    return %c0_i32, %arg0 : i32, i32
  }
  func.func @transform_1(%arg0: i32) -> (i32, i32) {
    %c0_i32 = arith.constant 0 : i32
    %c0_i32_0 = arith.constant 0 : i32
    %c0_i32_1 = arith.constant 0 : i32
    return %c0_i32, %c0_i32_0 : i32, i32
  }
  func.func @transform_2(%arg0: i32) -> (i32, i32) {
    %c0_i32 = arith.constant 0 : i32
    %c0_i32_0 = arith.constant 0 : i32
    %c0_i32_1 = arith.constant 0 : i32
    return %c0_i32, %c0_i32_0 : i32, i32
  }
  func.func @transform_3(%arg0: i32) -> (i32, i32) {
    %c0_i32 = arith.constant 0 : i32
    %c0_i32_0 = arith.constant 0 : i32
    %c0_i32_1 = arith.constant 0 : i32
    return %c0_i32, %c0_i32_0 : i32, i32
  }
  func.func @transform_4(%arg0: i32) -> (i32, i32) {
    %c0_i32 = arith.constant 0 : i32
    %c0_i32_0 = arith.constant 0 : i32
    return %c0_i32, %arg0 : i32, i32
  }
}

</mosaic_0001>

<llo_original>
// kernel: tpu_custom_call.1
$region0: #{tpu_custom_call.1}
  #allocation0 [shape = 'u32[]', space=smem, size = 0x4, offset = 0x4, fixed_abs, tag = 'smem constant byte address 0x4 - core index']
  #allocation1 [shape = 'u32[144,128]{1,0:T(1,128)}', space=vmem, size = 0x12000, scoped, tag = 'internal scratch']
  %s0 = inlined_call_operand.hbm [shape: f32[16,512], index: 0, kind: input, shape index: {}]
  %s1 = inlined_call_operand.vmem [shape: f32[8,16], index: 1, kind: input, shape index: {}]
  %s2 = inlined_call_operand.vmem [shape: f32[8,1], index: 2, kind: input, shape index: {}]
  %s3 = inlined_call_operand.vmem [shape: f32[8,1], index: 3, kind: input, shape index: {}]
  %s4 = inlined_call_operand.hbm [shape: f32[8,512], index: 4, kind: output, shape index: {}]
  %s5 = sld [smem:[#allocation0]]
  $region30: #{tpu_custom_call.1} parent=0
    _
  %s7 = ssub.s32 1, %s5
  %s8 = scalar_select 0, %s7, %s5
  $region1: #{tpu_custom_call.1} parent=0
    #allocation2 [shape = 'u8[32768]{0}', space=vmem, size = 0x8000, scoped, tag = 'input window, operand 0, single buffered']
    #allocation3 [shape = 's32[1]{0}', space=sflag, size = 0x4, scoped, tag = 'scoped memory for tpu_custom_call.1']
    #allocation4 [shape = 's32[1]{0}', space=sflag, size = 0x4, scoped, tag = 'scoped memory for tpu_custom_call.1']
    #allocation5 [shape = 'u8[16384]{0}', space=vmem, size = 0x4000, scoped, tag = 'output window, operand 0, single buffered']
    %9 = vsyncpa [#allocation3], 0
    %10 = vsyncpa [#allocation4], 0
    // Predicated region
    $region2: #{tpu_custom_call.1} parent=1 // pred_check
      _
    $region3: #{tpu_custom_call.1} parent=1 // pred_check_branch
      %12 = sbr.rel (0) target = $region5
    $region4: #{tpu_custom_call.1} parent=1 // pred_region
      %s14 = ssub.s32 1024, 1024
      %15 = vsyncadd [#allocation3], %s14
      %s16 = sshll.u32 [#allocation2], 4
      %s17 = int_to_ptr.vmem [resolvable:$true] %s16
      %22 = dma.hbm_to_vmem [thread:$0]  %s0, 1024, %s17, [#allocation3], 512, 512, 32
    $region5: #{tpu_custom_call.1} parent=1 // pred_fallthru
      _
    // Predicated region
    $region6: #{tpu_custom_call.1} parent=1 // pred_check
      _
    $region7: #{tpu_custom_call.1} parent=1 // pred_check_branch
      %24 = sbr.rel (0) target = $region9
    $region8: #{tpu_custom_call.1} parent=1 // pred_region
      _
    $region9: #{tpu_custom_call.1} parent=1 // pred_fallthru
      _
    // Predicated region
    $region10: #{tpu_custom_call.1} parent=1 // pred_check
      _
    $region11: #{tpu_custom_call.1} parent=1 // pred_check_branch
      %26 = sbr.rel (0) target = $region13
    $region12: #{tpu_custom_call.1} parent=1 // pred_region
      _
    $region13: #{tpu_custom_call.1} parent=1 // pred_fallthru
      _
    // Predicated region
    $region14: #{tpu_custom_call.1} parent=1 // pred_check
      _
    $region15: #{tpu_custom_call.1} parent=1 // pred_check_branch
      %28 = sbr.rel (0) target = $region17
    $region16: #{tpu_custom_call.1} parent=1 // pred_region
      _
    $region17: #{tpu_custom_call.1} parent=1 // pred_fallthru
      _
    // Predicated region
    $region18: #{tpu_custom_call.1} parent=1 // pred_check
      _
    $region19: #{tpu_custom_call.1} parent=1 // pred_check_branch
      %30 = sbr.rel (0) target = $region21
    $region20: #{tpu_custom_call.1} parent=1 // pred_region
      %31 = dma.done [#allocation3], 1024
    $region21: #{tpu_custom_call.1} parent=1 // pred_fallthru
      _
    %v32 = vld [vmem:[#allocation2] sm:$0xff]
    %v33 = vld [vmem:[#allocation2 + $0x8] sm:$0xff]
    %v34 = vld [vmem:[#allocation2 + $0x10] sm:$0xff]
    %v35 = vld [vmem:[#allocation2 + $0x18] sm:$0xff]
    %v36 = vld [vmem:[#allocation2 + $0x20] sm:$0xff]
    %v37 = vld [vmem:[#allocation2 + $0x28] sm:$0xff]
    %v38 = vld [vmem:[#allocation2 + $0x30] sm:$0xff]
    %v39 = vld [vmem:[#allocation2 + $0x38] sm:$0xff]
    %v40 = vld [vmem:[%s1] sm:$0xff]
    %vm41 = vcmask 130048
    %v43 = vsel %vm41, %v40, 0
    %45 = vmatprep.subr.mxu0 %v33
    %46 = vmatpush1.msra.mxu0 %v32
    %47 = vmatprep.subr.mxu0 %v37
    %48 = vmatpush1.msra.mxu0 %v36
    %49 = vmatprep.subr.mxu0 0.0
    %50 = vmatpush1.msra.mxu0 0.0
    %51 = vmatprep.subr.mxu0 0.0
    %52 = vmatpush1.msra.mxu0 0.0
    %53 = vmatprep.subr.mxu0 0.0
    %54 = vmatpush1.msra.mxu0 0.0
    %55 = vmatprep.subr.mxu0 0.0
    %56 = vmatpush1.msra.mxu0 0.0
    %57 = vmatprep.subr.mxu0 0.0
    %58 = vmatpush1.msra.mxu0 0.0
    %59 = vmatprep.subr.mxu0 0.0
    %60 = vmatpush1.msra.mxu0 0.0
    %61 = vmatprep.subr.mxu0 0.0
    %62 = vmatpush1.msra.mxu0 0.0
    %63 = vmatprep.subr.mxu0 0.0
    %64 = vmatpush1.msra.mxu0 0.0
    %65 = vmatprep.subr.mxu0 0.0
    %66 = vmatpush1.msra.mxu0 0.0
    %67 = vmatprep.subr.mxu0 0.0
    %68 = vmatpush1.msra.mxu0 0.0
    %69 = vmatprep.subr.mxu0 0.0
    %70 = vmatpush1.msra.mxu0 0.0
    %71 = vmatprep.subr.mxu0 0.0
    %72 = vmatpush1.msra.mxu0 0.0
    %73 = vmatprep.subr.mxu0 0.0
    %74 = vmatpush1.msra.mxu0 0.0
    %75 = vmatprep.subr.mxu0 0.0
    %76 = vmatpush1.msra.mxu0 0.0
    %77 = vmatprep.subr.mxu0 0.0
    %78 = vmatpush1.msra.mxu0 0.0
    %79 = vmatprep.subr.mxu0 0.0
    %80 = vmatpush1.msra.mxu0 0.0
    %81 = vmatprep.subr.mxu0 0.0
    %82 = vmatpush1.msra.mxu0 0.0
    %83 = vmatprep.subr.mxu0 0.0
    %84 = vmatpush1.msra.mxu0 0.0
    %85 = vmatprep.subr.mxu0 0.0
    %86 = vmatpush1.msra.mxu0 0.0
    %87 = vmatprep.subr.mxu0 0.0
    %88 = vmatpush1.msra.mxu0 0.0
    %89 = vmatprep.subr.mxu0 0.0
    %90 = vmatpush1.msra.mxu0 0.0
    %91 = vmatprep.subr.mxu0 0.0
    %92 = vmatpush1.msra.mxu0 0.0
    %93 = vmatprep.subr.mxu0 0.0
    %94 = vmatpush1.msra.mxu0 0.0
    %95 = vmatprep.subr.mxu0 0.0
    %96 = vmatpush1.msra.mxu0 0.0
    %97 = vmatprep.subr.mxu0 0.0
    %98 = vmatpush1.msra.mxu0 0.0
    %99 = vmatprep.subr.mxu0 0.0
    %100 = vmatpush1.msra.mxu0 0.0
    %101 = vmatprep.subr.mxu0 0.0
    %102 = vmatpush1.msra.mxu0 0.0
    %103 = vmatprep.subr.mxu0 0.0
    %104 = vmatpush1.msra.mxu0 0.0
    %105 = vmatprep.subr.mxu0 0.0
    %106 = vmatpush1.msra.mxu0 0.0
    %107 = vmatprep.subr.mxu0 0.0
    %108 = vmatpush1.msra.mxu0 0.0
    %109 = vmatprep.mubr.f32.mxu0 0.0
    %110 = vmatmul.mubr.f32.gmra.mrb[0].mxu0 %v43
    %v111 = vpop.f32.mrb[0].mxu0
    %v112 = vadd.f32 0.0, %v111
    %v113 = vpop.f32.mrb[0].mxu0
    %v114 = vadd.f32 0.0, %v113
    %115 = vdwg.mxu0
    %116 = vmatprep.subr.mxu0 %v35
    %117 = vmatpush1.msra.mxu0 %v34
    %118 = vmatprep.subr.mxu0 %v39
    %119 = vmatpush1.msra.mxu0 %v38
    %120 = vmatprep.subr.mxu0 0.0
    %121 = vmatpush1.msra.mxu0 0.0
    %122 = vmatprep.subr.mxu0 0.0
    %123 = vmatpush1.msra.mxu0 0.0
    %124 = vmatprep.subr.mxu0 0.0
    %125 = vmatpush1.msra.mxu0 0.0
    %126 = vmatprep.subr.mxu0 0.0
    %127 = vmatpush1.msra.mxu0 0.0
    %128 = vmatprep.subr.mxu0 0.0
    %129 = vmatpush1.msra.mxu0 0.0
    %130 = vmatprep.subr.mxu0 0.0
    %131 = vmatpush1.msra.mxu0 0.0
    %132 = vmatprep.subr.mxu0 0.0
    %133 = vmatpush1.msra.mxu0 0.0
    %134 = vmatprep.subr.mxu0 0.0
    %135 = vmatpush1.msra.mxu0 0.0
    %136 = vmatprep.subr.mxu0 0.0
    %137 = vmatpush1.msra.mxu0 0.0
    %138 = vmatprep.subr.mxu0 0.0
    %139 = vmatpush1.msra.mxu0 0.0
    %140 = vmatprep.subr.mxu0 0.0
    %141 = vmatpush1.msra.mxu0 0.0
    %142 = vmatprep.subr.mxu0 0.0
    %143 = vmatpush1.msra.mxu0 0.0
    %144 = vmatprep.subr.mxu0 0.0
    %145 = vmatpush1.msra.mxu0 0.0
    %146 = vmatprep.subr.mxu0 0.0
    %147 = vmatpush1.msra.mxu0 0.0
    %148 = vmatprep.subr.mxu0 0.0
    %149 = vmatpush1.msra.mxu0 0.0
    %150 = vmatprep.subr.mxu0 0.0
    %151 = vmatpush1.msra.mxu0 0.0
    %152 = vmatprep.subr.mxu0 0.0
    %153 = vmatpush1.msra.mxu0 0.0
    %154 = vmatprep.subr.mxu0 0.0
    %155 = vmatpush1.msra.mxu0 0.0
    %156 = vmatprep.subr.mxu0 0.0
    %157 = vmatpush1.msra.mxu0 0.0
    %158 = vmatprep.subr.mxu0 0.0
    %159 = vmatpush1.msra.mxu0 0.0
    %160 = vmatprep.subr.mxu0 0.0
    %161 = vmatpush1.msra.mxu0 0.0
    %162 = vmatprep.subr.mxu0 0.0
    %163 = vmatpush1.msra.mxu0 0.0
    %164 = vmatprep.subr.mxu0 0.0
    %165 = vmatpush1.msra.mxu0 0.0
    %166 = vmatprep.subr.mxu0 0.0
    %167 = vmatpush1.msra.mxu0 0.0
    %168 = vmatprep.subr.mxu0 0.0
    %169 = vmatpush1.msra.mxu0 0.0
    %170 = vmatprep.subr.mxu0 0.0
    %171 = vmatpush1.msra.mxu0 0.0
    %172 = vmatprep.subr.mxu0 0.0
    %173 = vmatpush1.msra.mxu0 0.0
    %174 = vmatprep.subr.mxu0 0.0
    %175 = vmatpush1.msra.mxu0 0.0
    %176 = vmatprep.subr.mxu0 0.0
    %177 = vmatpush1.msra.mxu0 0.0
    %178 = vmatprep.subr.mxu0 0.0
    %179 = vmatpush1.msra.mxu0 0.0
    %180 = vmatprep.mubr.f32.mxu0 0.0
    %181 = vmatmul.mubr.f32.gmra.mrb[0].mxu0 %v43
    %v182 = vpop.f32.mrb[0].mxu0
    %v183 = vadd.f32 0.0, %v182
    %v184 = vpop.f32.mrb[0].mxu0
    %v185 = vadd.f32 0.0, %v184
    %186 = vdwg.mxu0
    %v187 = vld [vmem:[%s2] sm:$0xff]
    %189 = vset.pattern.permute.xlu0 0
    %190 = vperm.xlu0 %189, %v187
    %v191 = vpop.permute.xlu0 %190
    %v193 = vmul.f32 %v112, %v191
    %v194 = vmul.f32 %v114, %v191
    %v195 = vmul.f32 %v183, %v191
    %v196 = vmul.f32 %v185, %v191
    %v197 = vld [vmem:[%s3] sm:$0xff]
    %199 = vset.pattern.permute.xlu0 0
    %200 = vperm.xlu0 %199, %v197
    %v201 = vpop.permute.xlu0 %200
    %v203 = vadd.f32 %v193, %v201
    %v204 = vadd.f32 %v194, %v201
    %v205 = vadd.f32 %v195, %v201
    %v206 = vadd.f32 %v196, %v201
    %v207 = vmax.f32 %v203, 0.0
    %v208 = vmax.f32 %v204, 0.0
    %v209 = vmax.f32 %v205, 0.0
    %v210 = vmax.f32 %v206, 0.0
    %211 = vst [vmem:[#allocation5] sm:$0xff] %v207
    %212 = vst [vmem:[#allocation5 + $0x8] sm:$0xff] %v208
    %213 = vst [vmem:[#allocation5 + $0x10] sm:$0xff] %v209
    %214 = vst [vmem:[#allocation5 + $0x18] sm:$0xff] %v210
    // Predicated region
    $region22: #{tpu_custom_call.1} parent=1 // pred_check
      _
    $region23: #{tpu_custom_call.1} parent=1 // pred_check_branch
      %216 = sbr.rel (0) target = $region25
    $region24: #{tpu_custom_call.1} parent=1 // pred_region
      %s218 = ssub.s32 512, 512
      %219 = vsyncadd [#allocation4], %s218
      %s221 = sshll.u32 [#allocation5], 4
      %s222 = int_to_ptr.vmem [resolvable:$true] %s221
      %224 = dma.vmem_to_hbm [thread:$0]  %s222, 512, %s4, [#allocation4]
    $region25: #{tpu_custom_call.1} parent=1 // pred_fallthru
      _
    // Predicated region
    $region26: #{tpu_custom_call.1} parent=1 // pred_check
      _
    $region27: #{tpu_custom_call.1} parent=1 // pred_check_branch
      %226 = sbr.rel (0) target = $region29
    $region28: #{tpu_custom_call.1} parent=1 // pred_region
      %227 = dma.done [#allocation4], 512
    $region29: #{tpu_custom_call.1} parent=1 // pred_fallthru
      _
    %228 = vsyncpa [#allocation3], 1
    %229 = vsyncpa [#allocation4], 1

</llo_original>
